<compile_context>
chip_gen: v7x
topology: tpu7x:2x2x1
jax: 0.10.0
libtpu: 0.0.40
codegen_flags: <defaults>
</compile_context>

<pallas_src>
import functools

import jax
import jax.numpy as jnp
from jax.experimental import pallas as pl
from jax.experimental.pallas import tpu as pltpu


def _round_up(x, m):
    return (x + m - 1) // m * m


def _small_out(in_f, out_f):
    """Layers with a tiny output width: computed as VPU multiply + XLU sublane
    reduce (weight packed pre-transposed) instead of an MXU matmul."""
    return in_f > 8 and out_f <= 8


def _choose_tile(n, target):
    """Lane-aligned batch tile.  Prefer an even grid-step count so
    dimension_semantics=("parallel",) shards evenly across v7x's two
    TensorCores, but never inflate zero-padding beyond ~25% of the batch."""
    n128 = _round_up(n, 128)
    tile = min(target, n128)
    steps = -(-n128 // tile)
    if steps % 2 == 1:
        cand_tile = max(128, _round_up(-(-n128 // (steps + 1)), 128))
        cand_steps = -(-n128 // cand_tile)
        if cand_steps % 2 == 0 and cand_steps * cand_tile <= (5 * n128) // 4:
            tile, steps = cand_tile, cand_steps
    return tile, steps * tile


def _pick_chunk(tile):
    """Largest lane-chunk (<=512) that divides the tile (tile % 128 == 0)."""
    for c in (512, 384, 256, 128):
        if tile % c == 0:
            return c
    return tile


def _mlp_kernel(layer_dims, chunk, use_bf16, x_ref, w_ref, b_ref, o_ref):
    """Whole-MLP forward on one batch tile, feature-major.

    x_ref: (in_dim, tile_n)        batch on the 128-lane axis
    w_ref: (depth, maxd, maxd)     zero-padded weight slab; PyTorch (out, in)
                                   layout except small-output layers, which
                                   are stored transposed (in, out)
    b_ref: (depth, maxd, 1)        zero-padded bias slab
    o_ref: (out_dim, tile_n)
    Hidden layers: tanh(W @ h + b); final layer: W @ h + b.
    """
    depth = len(layer_dims) - 1

    # Hoist all (tiny) parameter loads / operand casts out of the chunk loop.
    ws, bs = [], []
    for l in range(depth):
        in_f, out_f = layer_dims[l], layer_dims[l + 1]
        if _small_out(in_f, out_f):
            w = w_ref[l, 0:in_f, 0:out_f]            # pre-transposed (in_f, out_f)
        else:
            w = w_ref[l, 0:out_f, 0:in_f]            # (out_f, in_f)
            if use_bf16 and in_f > 8 and out_f > 8:
                w = w.astype(jnp.bfloat16)           # MXU operand cast (hoisted)
        ws.append(w)
        bs.append(b_ref[l, 0:out_f, :])              # (out_f, 1)

    tile_n = x_ref.shape[-1]
    # Lane-chunked layer chaining: each chunk's full layer chain stays
    # vreg-resident; no (hidden, tile_n) VMEM round trip between layers.
    for start in range(0, tile_n, chunk):
        sl = pl.ds(start, chunk)
        h = x_ref[:, sl].astype(jnp.float32)         # (in_dim, chunk)
        for l in range(depth):
            in_f, out_f = layer_dims[l], layer_dims[l + 1]
            w, b = ws[l], bs[l]
            if in_f <= 8:
                # Tiny contraction (2-feature input layer): rank-1 broadcast
                # FMAs on the VPU beat an MXU push/pop at K=2.
                acc = w[:, 0:1] * h[0:1, :]
                for k in range(1, in_f):
                    acc = acc + w[:, k:k + 1] * h[k:k + 1, :]
                h = acc + b
            elif out_f <= 8:
                # Tiny output (final layer): VPU multiply + XLU sublane reduce;
                # skips an M=1 MXU matmul and its result-FIFO/MRB drain.
                rows = [jnp.sum(w[:, m:m + 1] * h, axis=0, keepdims=True)
                        for m in range(out_f)]
                h = (rows[0] if out_f == 1
                     else jnp.concatenate(rows, axis=0)) + b
            else:
                rhs = h.astype(jnp.bfloat16) if use_bf16 else h
                h = jnp.dot(w, rhs, preferred_element_type=jnp.float32) + b
            if l < depth - 1:
                h = jnp.tanh(h)                      # f32 tanh (EUP)
        o_ref[:, sl] = h.astype(o_ref.dtype)


@functools.partial(jax.jit, static_argnums=(3, 4))
def _dnn_forward_jit(x, weights, biases, target_tile, use_bf16):
    n, in_dim = x.shape
    depth = len(weights)
    layer_dims = (int(in_dim),) + tuple(int(w.shape[0]) for w in weights)
    out_dim = layer_dims[-1]

    tile, n_pad = _choose_tile(n, target_tile)
    chunk = _pick_chunk(tile)

    # Feature-major input (in_dim, n_pad); transpose + zero-pad fuse with the
    # surrounding ops under this jit (no extra standalone HBM pass).
    x_t = jnp.zeros((in_dim, n_pad), jnp.float32).at[:, :n].set(
        jnp.asarray(x, jnp.float32).T)

    # Pack parameters into one weight slab + one bias slab: 3 kernel operands
    # total instead of 1 + 2*depth (fewer DMA channels / index-map evals).
    maxd = max(layer_dims)
    w_slab = jnp.zeros((depth, maxd, maxd), jnp.float32)
    b_slab = jnp.zeros((depth, maxd, 1), jnp.float32)
    for i, (w, b) in enumerate(zip(weights, biases)):
        w = jnp.asarray(w, jnp.float32)
        b = jnp.asarray(b, jnp.float32).reshape(-1, 1)
        out_f, in_f = w.shape
        if _small_out(in_f, out_f):
            w_slab = w_slab.at[i, :in_f, :out_f].set(w.T)  # stored transposed
        else:
            w_slab = w_slab.at[i, :out_f, :in_f].set(w)
        b_slab = b_slab.at[i, :out_f, :].set(b)

    kernel = functools.partial(_mlp_kernel, layer_dims, chunk, use_bf16)

    flops = 2 * n_pad * sum(layer_dims[i] * layer_dims[i + 1]
                            for i in range(depth))
    transcendentals = n_pad * int(sum(layer_dims[1:-1]))
    bytes_accessed = 4 * (in_dim * n_pad + out_dim * n_pad
                          + w_slab.size + b_slab.size)

    out_t = pl.pallas_call(
        kernel,
        out_shape=jax.ShapeDtypeStruct((out_dim, n_pad), jnp.float32),
        grid_spec=pltpu.PrefetchScalarGridSpec(
            num_scalar_prefetch=0,
            grid=(n_pad // tile,),
            in_specs=[
                pl.BlockSpec((in_dim, tile), lambda i: (0, i)),
                pl.BlockSpec(w_slab.shape, lambda i: (0, 0, 0)),
                pl.BlockSpec(b_slab.shape, lambda i: (0, 0, 0)),
            ],
            out_specs=pl.BlockSpec((out_dim, tile), lambda i: (0, i)),
        ),
        compiler_params=pltpu.CompilerParams(
            dimension_semantics=("parallel",),
        ),
        cost_estimate=pl.CostEstimate(
            flops=flops,
            transcendentals=transcendentals,
            bytes_accessed=bytes_accessed,
        ),
    )(x_t, w_slab, b_slab)

    # Undo feature-major layout and drop batch padding (fused under jit).
    return out_t[:, :n].T


def dnn_forward(x, weights, biases, *, tile_n=None, use_bf16_matmul=False):
    """Pallas forward pass equivalent to DNN(layers).forward(x).

    x:        (N, layers[0]) float32
    weights:  list of (layers[i+1], layers[i]) float32 (PyTorch Linear layout)
    biases:   list of (layers[i+1],)           float32
    returns:  (N, layers[-1]) float32
    """
    target = 8192 if tile_n is None else int(tile_n)
    return _dnn_forward_jit(x, tuple(weights), tuple(biases),
                            target, bool(use_bf16_matmul))


def dnn_reference(x, weights, biases):
    """Pure-JAX reference mirroring the PyTorch module exactly."""
    h = x
    depth = len(weights)
    for i, (w, b) in enumerate(zip(weights, biases)):
        h = h @ w.T + b
        if i < depth - 1:
            h = jnp.tanh(h)
    return h


if __name__ == "__main__":
    # PINN-style architecture: 2 inputs (x, t) -> 3 hidden tanh layers -> 1 out.
    layers = [2, 32, 32, 32, 1]
    depth = len(layers) - 1

    key = jax.random.PRNGKey(0)
    keys = jax.random.split(key, 2 * depth + 1)

    # Deterministic params (PyTorch Linear shapes: W (out, in), b (out,)).
    weights, biases = [], []
    for i in range(depth):
        fan_in = layers[i]
        bound = 1.0 / float(fan_in) ** 0.5
        weights.append(jax.random.uniform(
            keys[2 * i], (layers[i + 1], layers[i]), jnp.float32, -bound, bound))
        biases.append(jax.random.uniform(
            keys[2 * i + 1], (layers[i + 1],), jnp.float32, -bound, bound))

    # Batches: lane-aligned, ragged (zero-padding path), and multi-chunk /
    # multi-step (exercises even-step tiling + the lane-chunk loop).
    for n in (256, 200, 2048):
        x = jax.random.normal(keys[-1], (n, layers[0]), jnp.float32)
        out = jax.block_until_ready(dnn_forward(x, weights, biases))
        ref = dnn_reference(x, weights, biases)
        assert out.shape == (n, layers[-1])
        assert jnp.allclose(out, ref, atol=1e-4, rtol=1e-4), "f32 mismatch vs reference"

    # Optional bf16-operand MXU path (v6e/v7x): check it compiles, runs, and
    # stays close to the f32 reference in a relative-norm sense.
    x = jax.random.normal(keys[-1], (2048, layers[0]), jnp.float32)
    ref = dnn_reference(x, weights, biases)
    out_bf16 = jax.block_until_ready(
        dnn_forward(x, weights, biases, use_bf16_matmul=True))
    rel = jnp.linalg.norm(out_bf16 - ref) / (jnp.linalg.norm(ref) + 1e-12)
    assert out_bf16.shape == ref.shape
    assert float(rel) < 5e-2, f"bf16 path diverged: rel={float(rel)}"

    print("KERNEL_OK")
</pallas_src>

<mosaic_0001>
module attributes {stable_mosaic.version = 11 : i64} {
  func.func @_mlp_kernel(%arg0: i32, %arg1: memref<2x128xf32, #tpu.memory_space<vmem>>, %arg2: memref<4x32x32xf32, #tpu.memory_space<vmem>>, %arg3: memref<4x32x1xf32, #tpu.memory_space<vmem>>, %arg4: memref<1x128xf32, #tpu.memory_space<vmem>>) attributes {dimension_semantics = [#tpu.dimension_semantics<parallel>], iteration_bounds = array<i64: 2>, scalar_prefetch = 0 : i64, scratch_operands = 0 : i64, tpu.core_type = #tpu.core_type<tc>, window_params = [{transform_indices = @transform_0, window_bounds = array<i64: 2, 128>}, {pipeline_mode = #tpu.pipeline_mode<synchronous>, transform_indices = @transform_1, window_bounds = array<i64: 4, 32, 32>}, {pipeline_mode = #tpu.pipeline_mode<synchronous>, transform_indices = @transform_2, window_bounds = array<i64: 4, 32, 1>}, {transform_indices = @transform_3, window_bounds = array<i64: 1, 128>}]} {
    %c0 = arith.constant 0 : index
    %c0_0 = arith.constant 0 : index
    %c0_1 = arith.constant 0 : index
    %0 = vector.load %arg2[%c0, %c0_0, %c0_1] : memref<4x32x32xf32, #tpu.memory_space<vmem>>, vector<1x32x2xf32>
    %1 = vector.shape_cast %0 : vector<1x32x2xf32> to vector<32x2xf32>
    %c0_2 = arith.constant 0 : index
    %c0_3 = arith.constant 0 : index
    %c0_4 = arith.constant 0 : index
    %2 = vector.load %arg3[%c0_2, %c0_3, %c0_4] : memref<4x32x1xf32, #tpu.memory_space<vmem>>, vector<1x32x1xf32>
    %3 = vector.shape_cast %2 : vector<1x32x1xf32> to vector<32x1xf32>
    %c1 = arith.constant 1 : index
    %c0_5 = arith.constant 0 : index
    %c0_6 = arith.constant 0 : index
    %4 = vector.load %arg2[%c1, %c0_5, %c0_6] : memref<4x32x32xf32, #tpu.memory_space<vmem>>, vector<1x32x32xf32>
    %5 = vector.shape_cast %4 : vector<1x32x32xf32> to vector<32x32xf32>
    %c1_7 = arith.constant 1 : index
    %c0_8 = arith.constant 0 : index
    %c0_9 = arith.constant 0 : index
    %6 = vector.load %arg3[%c1_7, %c0_8, %c0_9] : memref<4x32x1xf32, #tpu.memory_space<vmem>>, vector<1x32x1xf32>
    %7 = vector.shape_cast %6 : vector<1x32x1xf32> to vector<32x1xf32>
    %c2 = arith.constant 2 : index
    %c0_10 = arith.constant 0 : index
    %c0_11 = arith.constant 0 : index
    %8 = vector.load %arg2[%c2, %c0_10, %c0_11] : memref<4x32x32xf32, #tpu.memory_space<vmem>>, vector<1x32x32xf32>
    %9 = vector.shape_cast %8 : vector<1x32x32xf32> to vector<32x32xf32>
    %c2_12 = arith.constant 2 : index
    %c0_13 = arith.constant 0 : index
    %c0_14 = arith.constant 0 : index
    %10 = vector.load %arg3[%c2_12, %c0_13, %c0_14] : memref<4x32x1xf32, #tpu.memory_space<vmem>>, vector<1x32x1xf32>
    %11 = vector.shape_cast %10 : vector<1x32x1xf32> to vector<32x1xf32>
    %c3 = arith.constant 3 : index
    %c0_15 = arith.constant 0 : index
    %c0_16 = arith.constant 0 : index
    %12 = vector.load %arg2[%c3, %c0_15, %c0_16] : memref<4x32x32xf32, #tpu.memory_space<vmem>>, vector<1x32x1xf32>
    %13 = vector.shape_cast %12 : vector<1x32x1xf32> to vector<32x1xf32>
    %c3_17 = arith.constant 3 : index
    %c0_18 = arith.constant 0 : index
    %c0_19 = arith.constant 0 : index
    %14 = vector.load %arg3[%c3_17, %c0_18, %c0_19] : memref<4x32x1xf32, #tpu.memory_space<vmem>>, vector<1x1x1xf32>
    %15 = vector.shape_cast %14 : vector<1x1x1xf32> to vector<1x1xf32>
    %c0_20 = arith.constant 0 : index
    %c0_21 = arith.constant 0 : index
    %16 = vector.load %arg1[%c0_20, %c0_21] : memref<2x128xf32, #tpu.memory_space<vmem>>, vector<2x128xf32>
    %17 = vector.extract_strided_slice %1 {offsets = [0, 0], sizes = [32, 1], strides = [1, 1]} : vector<32x2xf32> to vector<32x1xf32>
    %18 = vector.extract_strided_slice %16 {offsets = [0, 0], sizes = [1, 128], strides = [1, 1]} : vector<2x128xf32> to vector<1x128xf32>
    %19 = vector.broadcast %17 : vector<32x1xf32> to vector<32x128xf32>
    %20 = vector.broadcast %18 : vector<1x128xf32> to vector<32x128xf32>
    %21 = arith.mulf %19, %20 : vector<32x128xf32>
    %22 = vector.extract_strided_slice %1 {offsets = [0, 1], sizes = [32, 1], strides = [1, 1]} : vector<32x2xf32> to vector<32x1xf32>
    %23 = vector.extract_strided_slice %16 {offsets = [1, 0], sizes = [1, 128], strides = [1, 1]} : vector<2x128xf32> to vector<1x128xf32>
    %24 = vector.broadcast %22 : vector<32x1xf32> to vector<32x128xf32>
    %25 = vector.broadcast %23 : vector<1x128xf32> to vector<32x128xf32>
    %26 = arith.mulf %24, %25 : vector<32x128xf32>
    %27 = arith.addf %21, %26 : vector<32x128xf32>
    %28 = vector.broadcast %3 : vector<32x1xf32> to vector<32x128xf32>
    %29 = arith.addf %27, %28 : vector<32x128xf32>
    %30 = math.tanh %29 : vector<32x128xf32>
    %cst = arith.constant dense<0.000000e+00> : vector<32x128xf32>
    %31 = tpu.matmul %5, %30, %cst {dimension_numbers = #tpu.dot_dimension_numbers<[1], [0], [0], [1], [0, 0, 1, 1], [], []>} : vector<32x32xf32>, vector<32x128xf32>, vector<32x128xf32> -> vector<32x128xf32>
    %32 = vector.broadcast %7 : vector<32x1xf32> to vector<32x128xf32>
    %33 = arith.addf %31, %32 : vector<32x128xf32>
    %34 = math.tanh %33 : vector<32x128xf32>
    %cst_22 = arith.constant dense<0.000000e+00> : vector<32x128xf32>
    %35 = tpu.matmul %9, %34, %cst_22 {dimension_numbers = #tpu.dot_dimension_numbers<[1], [0], [0], [1], [0, 0, 1, 1], [], []>} : vector<32x32xf32>, vector<32x128xf32>, vector<32x128xf32> -> vector<32x128xf32>
    %36 = vector.broadcast %11 : vector<32x1xf32> to vector<32x128xf32>
    %37 = arith.addf %35, %36 : vector<32x128xf32>
    %38 = math.tanh %37 : vector<32x128xf32>
    %39 = vector.broadcast %13 : vector<32x1xf32> to vector<32x128xf32>
    %40 = arith.mulf %39, %38 : vector<32x128xf32>
    %cst_23 = arith.constant dense<0.000000e+00> : vector<128xf32>
    %41 = vector.multi_reduction <add>, %40, %cst_23 [0] : vector<32x128xf32> to vector<128xf32>
    %42 = vector.shape_cast %41 : vector<128xf32> to vector<1x128xf32>
    %43 = vector.broadcast %15 : vector<1x1xf32> to vector<1x128xf32>
    %44 = arith.addf %42, %43 : vector<1x128xf32>
    %c0_24 = arith.constant 0 : index
    %c0_25 = arith.constant 0 : index
    %45 = vector.load %arg4[%c0_24, %c0_25] : memref<1x128xf32, #tpu.memory_space<vmem>>, vector<1x128xf32>
    tpu.vector_store %arg4[%c0_24, %c0_25], %44 {strides = array<i32>} : memref<1x128xf32, #tpu.memory_space<vmem>>, vector<1x128xf32>,
    return
  }
  func.func @transform_0(%arg0: i32) -> (i32, i32) {
    %c0_i32 = arith.constant 0 : i32
    %c0_i32_0 = arith.constant 0 : i32
    return %c0_i32, %arg0 : i32, i32
  }
  func.func @transform_1(%arg0: i32) -> (i32, i32, i32) {
    %c0_i32 = arith.constant 0 : i32
    %c0_i32_0 = arith.constant 0 : i32
    %c0_i32_1 = arith.constant 0 : i32
    %c0_i32_2 = arith.constant 0 : i32
    return %c0_i32, %c0_i32_0, %c0_i32_1 : i32, i32, i32
  }
  func.func @transform_2(%arg0: i32) -> (i32, i32, i32) {
    %c0_i32 = arith.constant 0 : i32
    %c0_i32_0 = arith.constant 0 : i32
    %c0_i32_1 = arith.constant 0 : i32
    %c0_i32_2 = arith.constant 0 : i32
    return %c0_i32, %c0_i32_0, %c0_i32_1 : i32, i32, i32
  }
  func.func @transform_3(%arg0: i32) -> (i32, i32) {
    %c0_i32 = arith.constant 0 : i32
    %c0_i32_0 = arith.constant 0 : i32
    return %c0_i32, %arg0 : i32, i32
  }
}

</mosaic_0001>

<llo_original>
// kernel: _dnn_forward_jit.1
$region0: #{_dnn_forward_jit.1}
  #allocation0 [shape = 'u32[]', space=smem, size = 0x4, offset = 0x4, fixed_abs, tag = 'smem constant byte address 0x4 - core index']
  #allocation1 [shape = 'u32[144,128]{1,0:T(1,128)}', space=vmem, size = 0x12000, scoped, tag = 'internal scratch']
  %s0 = inlined_call_operand.vmem [shape: f32[2,256], index: 0, kind: input, shape index: {}]
  %s1 = inlined_call_operand.vmem [shape: f32[4,32,32], index: 1, kind: input, shape index: {}]
  %s2 = inlined_call_operand.vmem [shape: f32[4,32,1], index: 2, kind: input, shape index: {}]
  %s3 = inlined_call_operand.hbm [shape: f32[1,256], index: 3, kind: output, shape index: {}]
  %s4 = sld [smem:[#allocation0]]
  $region45: #{_dnn_forward_jit.1} parent=0
    _
  %s6 = ssub.s32 1, %s4
  %s7 = scalar_select 0, %s6, %s4
  $region1: #{_dnn_forward_jit.1} parent=0
    #allocation2 [shape = 'u8[1024]{0}', space=vmem, size = 0x400, scoped, tag = 'output window, operand 0']
    #allocation3 [shape = 's32[2]{0}', space=sflag, size = 0x8, scoped, tag = 'scoped memory for _dnn_forward_jit.1']
    %8 = vsyncpa [#allocation3], 0
    %s9 = scalar_lea.sflag [#allocation3], 1
    %10 = vsyncpa %s9, 0
    loop: start=0, step=1, limit=4
    $region2: #{_dnn_forward_jit.1} parent=1 // loop_pre_header
      _
    $region3: #{_dnn_forward_jit.1} parent=1 // loop_header
      %s12 = sphi 0, %s16
      %p13 = scmp.ge.s32.totalorder %s12, 4
      %s22 = sphi 0, %s24
      %s25 = sphi 0, %s22
      %s26 = sphi 0, %s25
      %s42 = sphi 0, %s26
      %s46 = sphi 0, %s46
      %s48 = sphi 0, %s46
      %s49 = sphi 0, %s48
      %s63 = sphi 0, %s49
      %s67 = sphi 0, %s67
      %s69 = sphi 0, %s67
      %s70 = sphi 0, %s69
      %s84 = sphi 0, %s70
      %s90 = sphi 0, %s92
      %s93 = sphi 0, %s90
      %s94 = sphi 0, %s93
      %s110 = sphi 0, %s94
    $region4: #{_dnn_forward_jit.1} parent=1 // loop_header_branch
      %15 = sbr.rel (%p13) target = $region8
    $region5: #{_dnn_forward_jit.1} parent=1 // loop_body
      %s17 = ssub.s32 %s12, 1
      %s18 = ssub.s32 %s12, 2
      %s19 = sadd.s32 %s12, 1
      %s20 = ssub.s32 %s12, %s19
      %p21 = scmp.eq.s32.totalorder %s20, 0
      %s23 = sadd.s32 %s22, 1
      %s24 = scalar_select %p21, %s22, %s23
      %p27 = pneg %p21
      %p28 = scmp.eq.s32.totalorder %s12, 1
      %p29 = por %p27, %p28
      %p30 = scmp.ne.s32.totalorder %s22, %s25
      %p31 = scmp.eq.s32.totalorder %s12, 0
      %p32 = por %p30, %p31
      %p33 = scmp.ne.s32.totalorder %s22, %s25
      %p34 = scmp.eq.s32.totalorder %s17, 1
      %p35 = por %p33, %p34
      %p36 = scmp.ne.s32.totalorder %s25, %s26
      %p37 = scmp.eq.s32.totalorder %s17, 0
      %p38 = por %p36, %p37
      %p39 = scmp.ne.s32.totalorder %s25, %s26
      %p40 = scmp.eq.s32.totalorder %s18, 1
      %p41 = por %p39, %p40
      %p43 = scmp.ne.s32.totalorder %s26, %s42
      %p44 = scmp.eq.s32.totalorder %s18, 0
      %p45 = por %p43, %p44
      %s47 = sadd.s32 %s46, 1
      %p50 = scmp.eq.s32.totalorder %s12, 1
      %p51 = scmp.ne.s32.totalorder %s46, %s48
      %p52 = scmp.eq.s32.totalorder %s12, 0
      %p53 = por %p51, %p52
      %p54 = scmp.ne.s32.totalorder %s46, %s48
      %p55 = scmp.eq.s32.totalorder %s17, 1
      %p56 = por %p54, %p55
      %p57 = scmp.ne.s32.totalorder %s48, %s49
      %p58 = scmp.eq.s32.totalorder %s17, 0
      %p59 = por %p57, %p58
      %p60 = scmp.ne.s32.totalorder %s48, %s49
      %p61 = scmp.eq.s32.totalorder %s18, 1
      %p62 = por %p60, %p61
      %p64 = scmp.ne.s32.totalorder %s49, %s63
      %p65 = scmp.eq.s32.totalorder %s18, 0
      %p66 = por %p64, %p65
      %s68 = sadd.s32 %s67, 1
      %p71 = scmp.eq.s32.totalorder %s12, 1
      %p72 = scmp.ne.s32.totalorder %s67, %s69
      %p73 = scmp.eq.s32.totalorder %s12, 0
      %p74 = por %p72, %p73
      %p75 = scmp.ne.s32.totalorder %s67, %s69
      %p76 = scmp.eq.s32.totalorder %s17, 1
      %p77 = por %p75, %p76
      %p78 = scmp.ne.s32.totalorder %s69, %s70
      %p79 = scmp.eq.s32.totalorder %s17, 0
      %p80 = por %p78, %p79
      %p81 = scmp.ne.s32.totalorder %s69, %s70
      %p82 = scmp.eq.s32.totalorder %s18, 1
      %p83 = por %p81, %p82
      %p85 = scmp.ne.s32.totalorder %s70, %s84
      %p86 = scmp.eq.s32.totalorder %s18, 0
      %p87 = por %p85, %p86
      %s88 = ssub.s32 %s12, %s19
      %p89 = scmp.eq.s32.totalorder %s88, 0
      %s91 = sadd.s32 %s90, 1
      %s92 = scalar_select %p89, %s90, %s91
      %p95 = pneg %p89
      %p96 = scmp.eq.s32.totalorder %s12, 1
      %p97 = por %p95, %p96
      %p98 = scmp.ne.s32.totalorder %s90, %s93
      %p99 = scmp.eq.s32.totalorder %s12, 0
      %p100 = por %p98, %p99
      %p101 = scmp.ne.s32.totalorder %s90, %s93
      %p102 = scmp.eq.s32.totalorder %s17, 1
      %p103 = por %p101, %p102
      %p104 = scmp.ne.s32.totalorder %s93, %s94
      %p105 = scmp.eq.s32.totalorder %s17, 0
      %p106 = por %p104, %p105
      %p107 = scmp.ne.s32.totalorder %s93, %s94
      %p108 = scmp.eq.s32.totalorder %s18, 1
      %p109 = por %p107, %p108
      %p111 = scmp.ne.s32.totalorder %s94, %s110
      %p112 = scmp.eq.s32.totalorder %s18, 0
      %p113 = por %p111, %p112
      %p114 = scmp.le.s32.totalorder 1, %s12
      %p115 = scmp.lt.s32.totalorder %s12, 3
      %p116 = pnand %p114, %p115
      %p117 = pneg %p116
      // Predicated region
      $region9: #{_dnn_forward_jit.1} parent=5 // pred_check
        _
      $region10: #{_dnn_forward_jit.1} parent=5 // pred_check_branch
        %119 = sbr.rel (%p116) target = $region12
      $region11: #{_dnn_forward_jit.1} parent=5 // pred_region
        %s120 = ssub.s32 %s12, 1
        // Predicated region
        $region13: #{_dnn_forward_jit.1} parent=11 // pred_check
          %p121 = pneg %p59
        $region14: #{_dnn_forward_jit.1} parent=11 // pred_check_branch
          %123 = sbr.rel (%p121) target = $region16
        $region15: #{_dnn_forward_jit.1} parent=11 // pred_region
          _
        $region16: #{_dnn_forward_jit.1} parent=11 // pred_fallthru
          _
        // Predicated region
        $region17: #{_dnn_forward_jit.1} parent=11 // pred_check
          %p124 = pneg %p80
        $region18: #{_dnn_forward_jit.1} parent=11 // pred_check_branch
          %126 = sbr.rel (%p124) target = $region20
        $region19: #{_dnn_forward_jit.1} parent=11 // pred_region
          _
        $region20: #{_dnn_forward_jit.1} parent=11 // pred_fallthru
          _
      $region12: #{_dnn_forward_jit.1} parent=5 // pred_fallthru
        _
      %p127 = scmp.lt.s32.totalorder %s12, 2
      // Predicated region
      $region21: #{_dnn_forward_jit.1} parent=5 // pred_check
        %p128 = pneg %p127
      $region22: #{_dnn_forward_jit.1} parent=5 // pred_check_branch
        %130 = sbr.rel (%p128) target = $region24
      $region23: #{_dnn_forward_jit.1} parent=5 // pred_region
        // Predicated region
        $region25: #{_dnn_forward_jit.1} parent=23 // pred_check
          %p131 = pneg %p32
        $region26: #{_dnn_forward_jit.1} parent=23 // pred_check_branch
          %133 = sbr.rel (%p131) target = $region28
        $region27: #{_dnn_forward_jit.1} parent=23 // pred_region
          %p134 = scmp.lt.s32.totalorder %s12, 1
          %s135 = scalar_select %p134, %s12, 1
          %s136 = smul.addr %s135, 2
          %s137 = scalar_lea.vmem %s0, %s136
        $region28: #{_dnn_forward_jit.1} parent=23 // pred_fallthru
          _
      $region24: #{_dnn_forward_jit.1} parent=5 // pred_fallthru
        _
      %p138 = scmp.le.s32.totalorder 1, %s12
      %p139 = scmp.lt.s32.totalorder %s12, 3
      %p140 = pnand %p138, %p139
      %p141 = pneg %p140
      // Predicated region
      $region29: #{_dnn_forward_jit.1} parent=5 // pred_check
        _
      $region30: #{_dnn_forward_jit.1} parent=5 // pred_check_branch
        %143 = sbr.rel (%p140) target = $region32
      $region31: #{_dnn_forward_jit.1} parent=5 // pred_region
        %s144 = ssub.s32 %s12, 1
        %p145 = scmp.lt.s32.totalorder %s17, 1
        %s146 = scalar_select %p145, %s17, 1
        %s147 = smul.addr %s146, 2
        %s148 = scalar_lea.vmem %s0, %s147
        %p149 = pneg %p38
        %p150 = pneg %p35
        %p151 = pneg %p59
        %p152 = pneg %p56
        %p153 = pneg %p80
        %p154 = pneg %p77
        %p155 = pneg %p106
        %p156 = pneg %p103
        %s157 = sand.u32 %s93, 1
        %s158 = scalar_lea.sflag [#allocation3], %s157
        %s159 = sand.u32 %s93, 1
        %s160 = scalar_lea.vmem [#allocation2], %s159
        %p161 = scmp.lt.s32.totalorder %s17, 1
        %s162 = scalar_select %p161, %s17, 1
        %s163 = smul.addr %s162, 2
        %s164 = scalar_lea.vmem %s0, %s163
        %v165 = vld [vmem:[%s1] sm:$0xff]
        %v166 = vld [vmem:[%s1 + $0x8] sm:$0xff]
        %v167 = vld [vmem:[%s1 + $0x10] sm:$0xff]
        %v168 = vld [vmem:[%s1 + $0x18] sm:$0xff]
        %v169 = vld [vmem:[%s2] sm:$0xff]
        %v170 = vld [vmem:[%s2 + $0x8] sm:$0xff]
        %v171 = vld [vmem:[%s2 + $0x10] sm:$0xff]
        %v172 = vld [vmem:[%s2 + $0x18] sm:$0xff]
        %s173 = scalar_lea.vmem %s1, 32
        %v174 = vld [vmem:[%s173] sm:$0xff]
        %v175 = vld [vmem:[%s173 + $0x8] sm:$0xff]
        %v176 = vld [vmem:[%s173 + $0x10] sm:$0xff]
        %v177 = vld [vmem:[%s173 + $0x18] sm:$0xff]
        %s178 = scalar_lea.vmem %s2, 32
        %v179 = vld [vmem:[%s178] sm:$0xff]
        %v180 = vld [vmem:[%s178 + $0x8] sm:$0xff]
        %v181 = vld [vmem:[%s178 + $0x10] sm:$0xff]
        %v182 = vld [vmem:[%s178 + $0x18] sm:$0xff]
        %s183 = scalar_lea.vmem %s1, 64
        %v184 = vld [vmem:[%s183] sm:$0xff]
        %v185 = vld [vmem:[%s183 + $0x8] sm:$0xff]
        %v186 = vld [vmem:[%s183 + $0x10] sm:$0xff]
        %v187 = vld [vmem:[%s183 + $0x18] sm:$0xff]
        %s188 = scalar_lea.vmem %s2, 64
        %v189 = vld [vmem:[%s188] sm:$0xff]
        %v190 = vld [vmem:[%s188 + $0x8] sm:$0xff]
        %v191 = vld [vmem:[%s188 + $0x10] sm:$0xff]
        %v192 = vld [vmem:[%s188 + $0x18] sm:$0xff]
        %s193 = scalar_lea.vmem %s1, 96
        %v194 = vld [vmem:[%s193] sm:$0xff]
        %v195 = vld [vmem:[%s193 + $0x8] sm:$0xff]
        %v196 = vld [vmem:[%s193 + $0x10] sm:$0xff]
        %v197 = vld [vmem:[%s193 + $0x18] sm:$0xff]
        %s198 = scalar_lea.vmem %s2, 96
        %v199 = vld [vmem:[%s198] sm:$0x1]
        %v200 = vld [vmem:[%s164] sm:$0x3]
        %202 = vset.pattern.permute.xlu0 0
        %203 = vperm.xlu0 %202, %v165
        %v204 = vpop.permute.xlu0 %203
        %207 = vset.pattern.permute.xlu0 0
        %208 = vperm.xlu0 %207, %v166
        %v209 = vpop.permute.xlu0 %208
        %212 = vset.pattern.permute.xlu0 0
        %213 = vperm.xlu0 %212, %v167
        %v214 = vpop.permute.xlu0 %213
        %217 = vset.pattern.permute.xlu0 0
        %218 = vperm.xlu0 %217, %v168
        %v219 = vpop.permute.xlu0 %218
        %v221 = vlaneseq
        %v222 = vshrl.u32 %v221, 7
        %v223 = vsub.s32 0, %v222
        %v224 = vrot.slane %v200, %v223
        %v225 = vmul.f32 %v204, %v224
        %v226 = vmul.f32 %v209, %v224
        %v227 = vmul.f32 %v214, %v224
        %v228 = vmul.f32 %v219, %v224
        %229 = vset.pattern.permute.xlu0 1
        %230 = vperm.xlu0 %229, %v165
        %v231 = vpop.permute.xlu0 %230
        %233 = vset.pattern.permute.xlu0 1
        %234 = vperm.xlu0 %233, %v166
        %v235 = vpop.permute.xlu0 %234
        %237 = vset.pattern.permute.xlu0 1
        %238 = vperm.xlu0 %237, %v167
        %v239 = vpop.permute.xlu0 %238
        %241 = vset.pattern.permute.xlu0 1
        %242 = vperm.xlu0 %241, %v168
        %v243 = vpop.permute.xlu0 %242
        %v245 = vlaneseq
        %v246 = vshrl.u32 %v245, 7
        %v247 = vsub.s32 1, %v246
        %v248 = vrot.slane %v200, %v247
        %v249 = vmul.f32 %v231, %v248
        %v250 = vmul.f32 %v235, %v248
        %v251 = vmul.f32 %v239, %v248
        %v252 = vmul.f32 %v243, %v248
        %v253 = vadd.f32 %v225, %v249
        %v254 = vadd.f32 %v226, %v250
        %v255 = vadd.f32 %v227, %v251
        %v256 = vadd.f32 %v228, %v252
        %258 = vset.pattern.permute.xlu0 0
        %259 = vperm.xlu0 %258, %v169
        %v260 = vpop.permute.xlu0 %259
        %263 = vset.pattern.permute.xlu0 0
        %264 = vperm.xlu0 %263, %v170
        %v265 = vpop.permute.xlu0 %264
        %268 = vset.pattern.permute.xlu0 0
        %269 = vperm.xlu0 %268, %v171
        %v270 = vpop.permute.xlu0 %269
        %273 = vset.pattern.permute.xlu0 0
        %274 = vperm.xlu0 %273, %v172
        %v275 = vpop.permute.xlu0 %274
        %v277 = vadd.f32 %v253, %v260
        %v278 = vadd.f32 %v254, %v265
        %v279 = vadd.f32 %v255, %v270
        %v280 = vadd.f32 %v256, %v275
        %v281 = vtanh.pop %v277
        %v282 = vtanh.pop %v278
        %v283 = vtanh.pop %v279
        %v284 = vtanh.pop %v280
        %286 = vset.pattern.permute.xlu0 0
        %287 = vperm.xlu0 %286, %v179
        %v288 = vpop.permute.xlu0 %287
        %291 = vset.pattern.permute.xlu0 0
        %292 = vperm.xlu0 %291, %v180
        %v293 = vpop.permute.xlu0 %292
        %296 = vset.pattern.permute.xlu0 0
        %297 = vperm.xlu0 %296, %v181
        %v298 = vpop.permute.xlu0 %297
        %301 = vset.pattern.permute.xlu0 0
        %302 = vperm.xlu0 %301, %v182
        %v303 = vpop.permute.xlu0 %302
        %vm305 = vcmask 261120
        %v307 = vsel %vm305, %v174, 0
        %v310 = vsel %vm305, %v175, 0
        %v313 = vsel %vm305, %v176, 0
        %v316 = vsel %vm305, %v177, 0
        %318 = vmatprep.subr.mxu0 0.0
        %319 = vmatpush1.msra.mxu0 %v281
        %320 = vmatprep.subr.mxu0 0.0
        %321 = vmatpush1.msra.mxu0 %v282
        %322 = vmatprep.subr.mxu0 0.0
        %323 = vmatpush1.msra.mxu0 %v283
        %324 = vmatprep.subr.mxu0 0.0
        %325 = vmatpush1.msra.mxu0 %v284
        %326 = vmatprep.subr.mxu0 0.0
        %327 = vmatpush1.msra.mxu0 0.0
        %328 = vmatprep.subr.mxu0 0.0
        %329 = vmatpush1.msra.mxu0 0.0
        %330 = vmatprep.subr.mxu0 0.0
        %331 = vmatpush1.msra.mxu0 0.0
        %332 = vmatprep.subr.mxu0 0.0
        %333 = vmatpush1.msra.mxu0 0.0
        %334 = vmatprep.subr.mxu0 0.0
        %335 = vmatpush1.msra.mxu0 0.0
        %336 = vmatprep.subr.mxu0 0.0
        %337 = vmatpush1.msra.mxu0 0.0
        %338 = vmatprep.subr.mxu0 0.0
        %339 = vmatpush1.msra.mxu0 0.0
        %340 = vmatprep.subr.mxu0 0.0
        %341 = vmatpush1.msra.mxu0 0.0
        %342 = vmatprep.subr.mxu0 0.0
        %343 = vmatpush1.msra.mxu0 0.0
        %344 = vmatprep.subr.mxu0 0.0
        %345 = vmatpush1.msra.mxu0 0.0
        %346 = vmatprep.subr.mxu0 0.0
        %347 = vmatpush1.msra.mxu0 0.0
        %348 = vmatprep.subr.mxu0 0.0
        %349 = vmatpush1.msra.mxu0 0.0
        %350 = vmatprep.subr.mxu0 0.0
        %351 = vmatpush1.msra.mxu0 0.0
        %352 = vmatprep.subr.mxu0 0.0
        %353 = vmatpush1.msra.mxu0 0.0
        %354 = vmatprep.subr.mxu0 0.0
        %355 = vmatpush1.msra.mxu0 0.0
        %356 = vmatprep.subr.mxu0 0.0
        %357 = vmatpush1.msra.mxu0 0.0
        %358 = vmatprep.subr.mxu0 0.0
        %359 = vmatpush1.msra.mxu0 0.0
        %360 = vmatprep.subr.mxu0 0.0
        %361 = vmatpush1.msra.mxu0 0.0
        %362 = vmatprep.subr.mxu0 0.0
        %363 = vmatpush1.msra.mxu0 0.0
        %364 = vmatprep.subr.mxu0 0.0
        %365 = vmatpush1.msra.mxu0 0.0
        %366 = vmatprep.subr.mxu0 0.0
        %367 = vmatpush1.msra.mxu0 0.0
        %368 = vmatprep.subr.mxu0 0.0
        %369 = vmatpush1.msra.mxu0 0.0
        %370 = vmatprep.subr.mxu0 0.0
        %371 = vmatpush1.msra.mxu0 0.0
        %372 = vmatprep.subr.mxu0 0.0
        %373 = vmatpush1.msra.mxu0 0.0
        %374 = vmatprep.subr.mxu0 0.0
        %375 = vmatpush1.msra.mxu0 0.0
        %376 = vmatprep.subr.mxu0 0.0
        %377 = vmatpush1.msra.mxu0 0.0
        %378 = vmatprep.subr.mxu0 0.0
        %379 = vmatpush1.msra.mxu0 0.0
        %380 = vmatprep.subr.mxu0 0.0
        %381 = vmatpush1.msra.mxu0 0.0
        %382 = vmatprep.mubr.f32.mxu0 0.0
        %383 = vmatmul.mubr.f32.gmra.mrb[0].mxu0 %v307
        %v384 = vpop.f32.mrb[0].mxu0
        %v385 = vadd.f32 %v288, %v384
        %v386 = vpop.f32.mrb[0].mxu0
        %387 = vmatprep.mubr.f32.mxu0 0.0
        %388 = vmatmul.mubr.f32.gmra.mrb[0].mxu0 %v310
        %v389 = vpop.f32.mrb[0].mxu0
        %v390 = vadd.f32 %v293, %v389
        %v391 = vpop.f32.mrb[0].mxu0
        %392 = vmatprep.mubr.f32.mxu0 0.0
        %393 = vmatmul.mubr.f32.gmra.mrb[0].mxu0 %v313
        %v394 = vpop.f32.mrb[0].mxu0
        %v395 = vadd.f32 %v298, %v394
        %v396 = vpop.f32.mrb[0].mxu0
        %397 = vmatprep.mubr.f32.mxu0 0.0
        %398 = vmatmul.mubr.f32.gmra.mrb[0].mxu0 %v316
        %v399 = vpop.f32.mrb[0].mxu0
        %v400 = vadd.f32 %v303, %v399
        %v401 = vpop.f32.mrb[0].mxu0
        %402 = vdwg.mxu0
        %v403 = vtanh.pop %v385
        %v404 = vtanh.pop %v390
        %v405 = vtanh.pop %v395
        %v406 = vtanh.pop %v400
        %408 = vset.pattern.permute.xlu0 0
        %409 = vperm.xlu0 %408, %v189
        %v410 = vpop.permute.xlu0 %409
        %413 = vset.pattern.permute.xlu0 0
        %414 = vperm.xlu0 %413, %v190
        %v415 = vpop.permute.xlu0 %414
        %418 = vset.pattern.permute.xlu0 0
        %419 = vperm.xlu0 %418, %v191
        %v420 = vpop.permute.xlu0 %419
        %423 = vset.pattern.permute.xlu0 0
        %424 = vperm.xlu0 %423, %v192
        %v425 = vpop.permute.xlu0 %424
        %v428 = vsel %vm305, %v184, 0
        %v431 = vsel %vm305, %v185, 0
        %v434 = vsel %vm305, %v186, 0
        %v437 = vsel %vm305, %v187, 0
        %439 = vmatprep.subr.mxu0 0.0
        %440 = vmatpush1.msra.mxu0 %v403
        %441 = vmatprep.subr.mxu0 0.0
        %442 = vmatpush1.msra.mxu0 %v404
        %443 = vmatprep.subr.mxu0 0.0
        %444 = vmatpush1.msra.mxu0 %v405
        %445 = vmatprep.subr.mxu0 0.0
        %446 = vmatpush1.msra.mxu0 %v406
        %447 = vmatprep.subr.mxu0 0.0
        %448 = vmatpush1.msra.mxu0 0.0
        %449 = vmatprep.subr.mxu0 0.0
        %450 = vmatpush1.msra.mxu0 0.0
        %451 = vmatprep.subr.mxu0 0.0
        %452 = vmatpush1.msra.mxu0 0.0
        %453 = vmatprep.subr.mxu0 0.0
        %454 = vmatpush1.msra.mxu0 0.0
        %455 = vmatprep.subr.mxu0 0.0
        %456 = vmatpush1.msra.mxu0 0.0
        %457 = vmatprep.subr.mxu0 0.0
        %458 = vmatpush1.msra.mxu0 0.0
        %459 = vmatprep.subr.mxu0 0.0
        %460 = vmatpush1.msra.mxu0 0.0
        %461 = vmatprep.subr.mxu0 0.0
        %462 = vmatpush1.msra.mxu0 0.0
        %463 = vmatprep.subr.mxu0 0.0
        %464 = vmatpush1.msra.mxu0 0.0
        %465 = vmatprep.subr.mxu0 0.0
        %466 = vmatpush1.msra.mxu0 0.0
        %467 = vmatprep.subr.mxu0 0.0
        %468 = vmatpush1.msra.mxu0 0.0
        %469 = vmatprep.subr.mxu0 0.0
        %470 = vmatpush1.msra.mxu0 0.0
        %471 = vmatprep.subr.mxu0 0.0
        %472 = vmatpush1.msra.mxu0 0.0
        %473 = vmatprep.subr.mxu0 0.0
        %474 = vmatpush1.msra.mxu0 0.0
        %475 = vmatprep.subr.mxu0 0.0
        %476 = vmatpush1.msra.mxu0 0.0
        %477 = vmatprep.subr.mxu0 0.0
        %478 = vmatpush1.msra.mxu0 0.0
        %479 = vmatprep.subr.mxu0 0.0
        %480 = vmatpush1.msra.mxu0 0.0
        %481 = vmatprep.subr.mxu0 0.0
        %482 = vmatpush1.msra.mxu0 0.0
        %483 = vmatprep.subr.mxu0 0.0
        %484 = vmatpush1.msra.mxu0 0.0
        %485 = vmatprep.subr.mxu0 0.0
        %486 = vmatpush1.msra.mxu0 0.0
        %487 = vmatprep.subr.mxu0 0.0
        %488 = vmatpush1.msra.mxu0 0.0
        %489 = vmatprep.subr.mxu0 0.0
        %490 = vmatpush1.msra.mxu0 0.0
        %491 = vmatprep.subr.mxu0 0.0
        %492 = vmatpush1.msra.mxu0 0.0
        %493 = vmatprep.subr.mxu0 0.0
        %494 = vmatpush1.msra.mxu0 0.0
        %495 = vmatprep.subr.mxu0 0.0
        %496 = vmatpush1.msra.mxu0 0.0
        %497 = vmatprep.subr.mxu0 0.0
        %498 = vmatpush1.msra.mxu0 0.0
        %499 = vmatprep.subr.mxu0 0.0
        %500 = vmatpush1.msra.mxu0 0.0
        %501 = vmatprep.subr.mxu0 0.0
        %502 = vmatpush1.msra.mxu0 0.0
        %503 = vmatprep.mubr.f32.mxu0 0.0
        %504 = vmatmul.mubr.f32.gmra.mrb[0].mxu0 %v428
        %v505 = vpop.f32.mrb[0].mxu0
        %v506 = vadd.f32 %v410, %v505
        %v507 = vpop.f32.mrb[0].mxu0
        %508 = vmatprep.mubr.f32.mxu0 0.0
        %509 = vmatmul.mubr.f32.gmra.mrb[0].mxu0 %v431
        %v510 = vpop.f32.mrb[0].mxu0
        %v511 = vadd.f32 %v415, %v510
        %v512 = vpop.f32.mrb[0].mxu0
        %513 = vmatprep.mubr.f32.mxu0 0.0
        %514 = vmatmul.mubr.f32.gmra.mrb[0].mxu0 %v434
        %v515 = vpop.f32.mrb[0].mxu0
        %v516 = vadd.f32 %v420, %v515
        %v517 = vpop.f32.mrb[0].mxu0
        %518 = vmatprep.mubr.f32.mxu0 0.0
        %519 = vmatmul.mubr.f32.gmra.mrb[0].mxu0 %v437
        %v520 = vpop.f32.mrb[0].mxu0
        %v521 = vadd.f32 %v425, %v520
        %v522 = vpop.f32.mrb[0].mxu0
        %523 = vdwg.mxu0
        %v524 = vtanh.pop %v506
        %v525 = vtanh.pop %v511
        %v526 = vtanh.pop %v516
        %v527 = vtanh.pop %v521
        %529 = vset.pattern.permute.xlu0 0
        %530 = vperm.xlu0 %529, %v194
        %v531 = vpop.permute.xlu0 %530
        %534 = vset.pattern.permute.xlu0 0
        %535 = vperm.xlu0 %534, %v195
        %v536 = vpop.permute.xlu0 %535
        %539 = vset.pattern.permute.xlu0 0
        %540 = vperm.xlu0 %539, %v196
        %v541 = vpop.permute.xlu0 %540
        %544 = vset.pattern.permute.xlu0 0
        %545 = vperm.xlu0 %544, %v197
        %v546 = vpop.permute.xlu0 %545
        %v548 = vmul.f32 %v531, %v524
        %v549 = vmul.f32 %v536, %v525
        %v550 = vmul.f32 %v541, %v526
        %v551 = vmul.f32 %v546, %v527
        %v552 = vadd.f32 %v548, %v549
        %v553 = vadd.f32 %v552, %v550
        %v554 = vadd.f32 %v553, %v551
        %v555 = vrot.slane %v554, 4
        %v556 = vadd.f32 %v554, %v555
        %v557 = vrot.slane %v556, 2
        %v558 = vadd.f32 %v556, %v557
        %v559 = vrot.slane %v558, 1
        %v560 = vadd.f32 %v558, %v559
        %562 = vset.pattern.permute.xlu0 0
        %563 = vperm.xlu0 %562, %v199
        %v564 = vpop.permute.xlu0 %563
        %v566 = vadd.f32 %v560, %v564
        %567 = vst [vmem:[%s160] sm:$0x1] %v566
        %s568 = sand.u32 %s93, 1
        %s569 = scalar_lea.sflag [#allocation3], %s568
        %s570 = sand.u32 %s93, 1
        %s571 = scalar_lea.vmem [#allocation2], %s570
        // Predicated region
        $region33: #{_dnn_forward_jit.1} parent=31 // pred_check
          %p572 = pneg %p103
        $region34: #{_dnn_forward_jit.1} parent=31 // pred_check_branch
          %574 = sbr.rel (%p572) target = $region36
        $region35: #{_dnn_forward_jit.1} parent=31 // pred_region
          %s576 = ssub.s32 16, 16
          %577 = vsyncadd %s569, %s576
          %s578 = smul.addr %s17, 16
          %s579 = scalar_lea.hbm %s3, %s578
          %s581 = sshll.u32 %s571, 4
          %s582 = int_to_ptr.vmem [resolvable:$true] %s581
          %584 = dma.vmem_to_hbm [thread:$0]  %s582, 16, %s579, %s569
        $region36: #{_dnn_forward_jit.1} parent=31 // pred_fallthru
          _
      $region32: #{_dnn_forward_jit.1} parent=5 // pred_fallthru
        _
      %p585 = scmp.le.s32.totalorder 2, %s12
      // Predicated region
      $region37: #{_dnn_forward_jit.1} parent=5 // pred_check
        %p586 = pneg %p585
      $region38: #{_dnn_forward_jit.1} parent=5 // pred_check_branch
        %588 = sbr.rel (%p586) target = $region40
      $region39: #{_dnn_forward_jit.1} parent=5 // pred_region
        %s589 = ssub.s32 %s12, 2
        // Predicated region
        $region41: #{_dnn_forward_jit.1} parent=39 // pred_check
          %p590 = pneg %p109
        $region42: #{_dnn_forward_jit.1} parent=39 // pred_check_branch
          %592 = sbr.rel (%p590) target = $region44
        $region43: #{_dnn_forward_jit.1} parent=39 // pred_region
          %s593 = sand.u32 %s94, 1
          %s594 = scalar_lea.sflag [#allocation3], %s593
          %s595 = sand.u32 %s94, 1
          %s596 = scalar_lea.vmem [#allocation2], %s595
          %597 = dma.done %s594, 16
        $region44: #{_dnn_forward_jit.1} parent=39 // pred_fallthru
          _
      $region40: #{_dnn_forward_jit.1} parent=5 // pred_fallthru
        _
    $region6: #{_dnn_forward_jit.1} parent=1 // loop_footer
      %s16 = sadd.s32 1, %s12
    $region7: #{_dnn_forward_jit.1} parent=1 // loop_footer_branch
      %11 = sbr.rel target = $region3
    $region8: #{_dnn_forward_jit.1} parent=1 // loop_exit
      _
    %598 = vsyncpa [#allocation3], 1
    %s599 = scalar_lea.sflag [#allocation3], 1
    %600 = vsyncpa %s599, 1

</llo_original>
